<compile_context>
chip_gen: v5e
topology: v5e:2x2
jax: 0.10.0
libtpu: 0.0.40
codegen_flags: <defaults>
</compile_context>

<pallas_src>
import jax
import jax.numpy as jnp
from jax.experimental import pallas as pl
from jax.experimental.pallas import tpu as pltpu


OUT_PAD = 128  # lane-dense padded width for the 10-class logits


def mlp2_kernel(x_ref, w1_ref, b1_ref, w2_ref, b2_ref, w3_ref, b3_ref, o_ref):
    # Hoist bias loads (JAX does not CSE broadcast_in_dim across expressions).
    b1 = b1_ref[...]
    b2 = b2_ref[...]
    b3 = b3_ref[...]

    x = x_ref[...]                                              # (TB, 784) bf16

    # fc1 + ReLU: bf16 MXU matmul, f32 accumulate, f32 bias/ReLU on the VPU.
    h1 = jnp.dot(x, w1_ref[...], preferred_element_type=jnp.float32) + b1
    h1 = jnp.maximum(h1, 0.0)

    # fc2 + ReLU
    h2 = jnp.dot(h1.astype(jnp.bfloat16), w2_ref[...],
                 preferred_element_type=jnp.float32) + b2
    h2 = jnp.maximum(h2, 0.0)

    # fc3 (padded to 128 output lanes -> unmasked full-vreg stores)
    o_ref[...] = jnp.dot(h2.astype(jnp.bfloat16), w3_ref[...],
                         preferred_element_type=jnp.float32) + b3


def _pick_batch_tile(batch):
    """Large tile for throughput; small batches just round up to a sublane multiple."""
    if batch >= 1024:
        return 1024
    return max(8, ((batch + 7) // 8) * 8)


def mlp2_forward(x_nchw, params):
    """x_nchw: (B, C, H, W) float32 with C*H*W == 784. Returns (B, 10) float32 logits."""
    w1, b1, w2, b2, w3, b3 = params

    B = x_nchw.shape[0]
    x_flat = x_nchw.reshape(B, -1)                              # view(B, C*H*W)
    D = x_flat.shape[1]

    # Batch tiling (pad batch up to a multiple of TB; padded rows are sliced off).
    TB = _pick_batch_tile(B)
    B_pad = ((B + TB - 1) // TB) * TB
    if B_pad != B:
        x_flat = jnp.pad(x_flat, ((0, B_pad - B), (0, 0)))
    grid = (B_pad // TB,)

    # bf16 streaming data / weights; biases stay f32 (added to the f32 accumulator).
    x_bf16 = x_flat.astype(jnp.bfloat16)
    w1_bf16 = w1.astype(jnp.bfloat16)
    w2_bf16 = w2.astype(jnp.bfloat16)

    # Pad layer 3 to a lane-dense (64, 128) / (1, 128); extra columns are zero.
    n_out = w3.shape[1]
    w3_pad = jnp.pad(w3, ((0, 0), (0, OUT_PAD - n_out))).astype(jnp.bfloat16)
    b3_pad = jnp.pad(b3, ((0, 0), (0, OUT_PAD - n_out)))

    out_padded = pl.pallas_call(
        mlp2_kernel,
        out_shape=jax.ShapeDtypeStruct((B_pad, OUT_PAD), jnp.float32),
        grid_spec=pltpu.PrefetchScalarGridSpec(
            num_scalar_prefetch=0,
            grid=grid,
            in_specs=[
                pl.BlockSpec((TB, D), lambda i: (i, 0)),        # x tile (streamed)
                pl.BlockSpec((D, 64), lambda i: (0, 0)),        # w1 (resident)
                pl.BlockSpec((1, 64), lambda i: (0, 0)),        # b1
                pl.BlockSpec((64, 64), lambda i: (0, 0)),       # w2
                pl.BlockSpec((1, 64), lambda i: (0, 0)),        # b2
                pl.BlockSpec((64, OUT_PAD), lambda i: (0, 0)),  # w3 (padded)
                pl.BlockSpec((1, OUT_PAD), lambda i: (0, 0)),   # b3 (padded)
            ],
            out_specs=pl.BlockSpec((TB, OUT_PAD), lambda i: (i, 0)),
        ),
        compiler_params=pltpu.CompilerParams(
            dimension_semantics=("parallel",),                  # megacore batch sharding (v7x)
            vmem_limit_bytes=64 * 1024 * 1024,
        ),
    )(x_bf16, w1_bf16, b1, w2_bf16, b2, w3_pad, b3_pad)

    return out_padded[:B, :n_out]


def init_params(key):
    """Mirror torch.nn.Linear default init: U(-1/sqrt(fan_in), 1/sqrt(fan_in)).

    Weights stored transposed relative to PyTorch: (in_features, out_features).
    Biases stored as (1, out_features) for TPU-friendly 2D broadcasting.
    """
    def linear(key, fan_in, fan_out):
        kw, kb = jax.random.split(key)
        bound = 1.0 / jnp.sqrt(fan_in)
        w = jax.random.uniform(kw, (fan_in, fan_out), jnp.float32, -bound, bound)
        b = jax.random.uniform(kb, (1, fan_out), jnp.float32, -bound, bound)
        return w, b

    k1, k2, k3 = jax.random.split(key, 3)
    w1, b1 = linear(k1, 28 * 28, 64)
    w2, b2 = linear(k2, 64, 64)
    w3, b3 = linear(k3, 64, 10)
    return (w1, b1, w2, b2, w3, b3)


def reference_forward(x_nchw, params):
    """Pure-JAX f32 reference of the PyTorch forward."""
    w1, b1, w2, b2, w3, b3 = params
    x = x_nchw.reshape(x_nchw.shape[0], -1)
    x = jnp.maximum(x @ w1 + b1, 0.0)
    x = jnp.maximum(x @ w2 + b2, 0.0)
    return x @ w3 + b3


if __name__ == "__main__":
    key = jax.random.PRNGKey(0)
    kx, kp = jax.random.split(key)

    # MNIST-shaped inputs: (B=2, C=1, H=28, W=28) -> 784 features (fc1 = Linear(784, 64)).
    x = jax.random.normal(kx, (2, 1, 28, 28), dtype=jnp.float32)
    params = init_params(kp)

    out = mlp2_forward(x, params)
    out = jax.block_until_ready(out)

    ref = reference_forward(x, params)
    assert out.shape == (2, 10)
    # bf16 data/weight path vs f32 reference -> loose-but-safe tolerance.
    assert jnp.allclose(out, ref, atol=5e-2, rtol=5e-2), (
        f"max abs diff {jnp.max(jnp.abs(out - ref))}")

    print("KERNEL_OK")
</pallas_src>

<mosaic_0001>
module attributes {stable_mosaic.version = 11 : i64} {
  func.func @mlp2_kernel(%arg0: i32, %arg1: memref<8x784xbf16, #tpu.memory_space<vmem>>, %arg2: memref<784x64xbf16, #tpu.memory_space<vmem>>, %arg3: memref<1x64xf32, #tpu.memory_space<vmem>>, %arg4: memref<64x64xbf16, #tpu.memory_space<vmem>>, %arg5: memref<1x64xf32, #tpu.memory_space<vmem>>, %arg6: memref<64x128xbf16, #tpu.memory_space<vmem>>, %arg7: memref<1x128xf32, #tpu.memory_space<vmem>>, %arg8: memref<8x128xf32, #tpu.memory_space<vmem>>) attributes {dimension_semantics = [#tpu.dimension_semantics<parallel>], iteration_bounds = array<i64: 1>, scalar_prefetch = 0 : i64, scratch_operands = 0 : i64, tpu.core_type = #tpu.core_type<tc>, window_params = [{transform_indices = @transform_0, window_bounds = array<i64: 8, 784>}, {pipeline_mode = #tpu.pipeline_mode<synchronous>, transform_indices = @transform_1, window_bounds = array<i64: 784, 64>}, {pipeline_mode = #tpu.pipeline_mode<synchronous>, transform_indices = @transform_2, window_bounds = array<i64: 1, 64>}, {pipeline_mode = #tpu.pipeline_mode<synchronous>, transform_indices = @transform_3, window_bounds = array<i64: 64, 64>}, {pipeline_mode = #tpu.pipeline_mode<synchronous>, transform_indices = @transform_4, window_bounds = array<i64: 1, 64>}, {pipeline_mode = #tpu.pipeline_mode<synchronous>, transform_indices = @transform_5, window_bounds = array<i64: 64, 128>}, {pipeline_mode = #tpu.pipeline_mode<synchronous>, transform_indices = @transform_6, window_bounds = array<i64: 1, 128>}, {transform_indices = @transform_7, window_bounds = array<i64: 8, 128>}]} {
    %c0 = arith.constant 0 : index
    %c0_0 = arith.constant 0 : index
    %0 = vector.load %arg3[%c0, %c0_0] : memref<1x64xf32, #tpu.memory_space<vmem>>, vector<1x64xf32>
    %c0_1 = arith.constant 0 : index
    %c0_2 = arith.constant 0 : index
    %1 = vector.load %arg5[%c0_1, %c0_2] : memref<1x64xf32, #tpu.memory_space<vmem>>, vector<1x64xf32>
    %c0_3 = arith.constant 0 : index
    %c0_4 = arith.constant 0 : index
    %2 = vector.load %arg7[%c0_3, %c0_4] : memref<1x128xf32, #tpu.memory_space<vmem>>, vector<1x128xf32>
    %c0_5 = arith.constant 0 : index
    %c0_6 = arith.constant 0 : index
    %3 = vector.load %arg1[%c0_5, %c0_6] : memref<8x784xbf16, #tpu.memory_space<vmem>>, vector<8x784xbf16>
    %c0_7 = arith.constant 0 : index
    %c0_8 = arith.constant 0 : index
    %4 = vector.load %arg2[%c0_7, %c0_8] : memref<784x64xbf16, #tpu.memory_space<vmem>>, vector<784x64xbf16>
    %cst = arith.constant dense<0.000000e+00> : vector<8x64xf32>
    %5 = tpu.matmul %3, %4, %cst {dimension_numbers = #tpu.dot_dimension_numbers<[1], [0], [0], [1], [0, 0, 1, 1], [], []>} : vector<8x784xbf16>, vector<784x64xbf16>, vector<8x64xf32> -> vector<8x64xf32>
    %6 = vector.broadcast %0 : vector<1x64xf32> to vector<8x64xf32>
    %7 = arith.addf %5, %6 : vector<8x64xf32>
    %cst_9 = arith.constant 0.000000e+00 : f32
    %8 = vector.broadcast %cst_9 : f32 to vector<8x64xf32>
    %9 = arith.maximumf %7, %8 : vector<8x64xf32>
    %10 = arith.truncf %9 : vector<8x64xf32> to vector<8x64xbf16>
    %c0_10 = arith.constant 0 : index
    %c0_11 = arith.constant 0 : index
    %11 = vector.load %arg4[%c0_10, %c0_11] : memref<64x64xbf16, #tpu.memory_space<vmem>>, vector<64x64xbf16>
    %cst_12 = arith.constant dense<0.000000e+00> : vector<8x64xf32>
    %12 = tpu.matmul %10, %11, %cst_12 {dimension_numbers = #tpu.dot_dimension_numbers<[1], [0], [0], [1], [0, 0, 1, 1], [], []>} : vector<8x64xbf16>, vector<64x64xbf16>, vector<8x64xf32> -> vector<8x64xf32>
    %13 = vector.broadcast %1 : vector<1x64xf32> to vector<8x64xf32>
    %14 = arith.addf %12, %13 : vector<8x64xf32>
    %cst_13 = arith.constant 0.000000e+00 : f32
    %15 = vector.broadcast %cst_13 : f32 to vector<8x64xf32>
    %16 = arith.maximumf %14, %15 : vector<8x64xf32>
    %17 = arith.truncf %16 : vector<8x64xf32> to vector<8x64xbf16>
    %c0_14 = arith.constant 0 : index
    %c0_15 = arith.constant 0 : index
    %18 = vector.load %arg6[%c0_14, %c0_15] : memref<64x128xbf16, #tpu.memory_space<vmem>>, vector<64x128xbf16>
    %cst_16 = arith.constant dense<0.000000e+00> : vector<8x128xf32>
    %19 = tpu.matmul %17, %18, %cst_16 {dimension_numbers = #tpu.dot_dimension_numbers<[1], [0], [0], [1], [0, 0, 1, 1], [], []>} : vector<8x64xbf16>, vector<64x128xbf16>, vector<8x128xf32> -> vector<8x128xf32>
    %20 = vector.broadcast %2 : vector<1x128xf32> to vector<8x128xf32>
    %21 = arith.addf %19, %20 : vector<8x128xf32>
    %c0_17 = arith.constant 0 : index
    %c0_18 = arith.constant 0 : index
    %22 = vector.load %arg8[%c0_17, %c0_18] : memref<8x128xf32, #tpu.memory_space<vmem>>, vector<8x128xf32>
    tpu.vector_store %arg8[%c0_17, %c0_18], %21 {strides = array<i32>} : memref<8x128xf32, #tpu.memory_space<vmem>>, vector<8x128xf32>,
    return
  }
  func.func @transform_0(%arg0: i32) -> (i32, i32) {
    %c0_i32 = arith.constant 0 : i32
    %c0_i32_0 = arith.constant 0 : i32
    return %arg0, %c0_i32 : i32, i32
  }
  func.func @transform_1(%arg0: i32) -> (i32, i32) {
    %c0_i32 = arith.constant 0 : i32
    %c0_i32_0 = arith.constant 0 : i32
    %c0_i32_1 = arith.constant 0 : i32
    return %c0_i32, %c0_i32_0 : i32, i32
  }
  func.func @transform_2(%arg0: i32) -> (i32, i32) {
    %c0_i32 = arith.constant 0 : i32
    %c0_i32_0 = arith.constant 0 : i32
    %c0_i32_1 = arith.constant 0 : i32
    return %c0_i32, %c0_i32_0 : i32, i32
  }
  func.func @transform_3(%arg0: i32) -> (i32, i32) {
    %c0_i32 = arith.constant 0 : i32
    %c0_i32_0 = arith.constant 0 : i32
    %c0_i32_1 = arith.constant 0 : i32
    return %c0_i32, %c0_i32_0 : i32, i32
  }
  func.func @transform_4(%arg0: i32) -> (i32, i32) {
    %c0_i32 = arith.constant 0 : i32
    %c0_i32_0 = arith.constant 0 : i32
    %c0_i32_1 = arith.constant 0 : i32
    return %c0_i32, %c0_i32_0 : i32, i32
  }
  func.func @transform_5(%arg0: i32) -> (i32, i32) {
    %c0_i32 = arith.constant 0 : i32
    %c0_i32_0 = arith.constant 0 : i32
    %c0_i32_1 = arith.constant 0 : i32
    return %c0_i32, %c0_i32_0 : i32, i32
  }
  func.func @transform_6(%arg0: i32) -> (i32, i32) {
    %c0_i32 = arith.constant 0 : i32
    %c0_i32_0 = arith.constant 0 : i32
    %c0_i32_1 = arith.constant 0 : i32
    return %c0_i32, %c0_i32_0 : i32, i32
  }
  func.func @transform_7(%arg0: i32) -> (i32, i32) {
    %c0_i32 = arith.constant 0 : i32
    %c0_i32_0 = arith.constant 0 : i32
    return %arg0, %c0_i32 : i32, i32
  }
}

</mosaic_0001>

<llo_original>
// kernel: tpu_custom_call.1
$region0: #{tpu_custom_call.1}
  #allocation0 [shape = 'u32[]', space=smem, size = 0x4, offset = 0x4, fixed_abs, tag = 'smem constant byte address 0x4 - core index']
  #allocation1 [shape = 'u32[72,128]{1,0:T(1,128)}', space=vmem, size = 0x9000, scoped, tag = 'internal scratch']
  %s0 = inlined_call_operand.vmem [shape: bf16[8,784], index: 0, kind: input, shape index: {}]
  %s1 = inlined_call_operand.vmem [shape: bf16[784,64], index: 1, kind: input, shape index: {}]
  %s2 = inlined_call_operand.vmem [shape: f32[1,64], index: 2, kind: input, shape index: {}]
  %s3 = inlined_call_operand.vmem [shape: bf16[64,64], index: 3, kind: input, shape index: {}]
  %s4 = inlined_call_operand.vmem [shape: f32[1,64], index: 4, kind: input, shape index: {}]
  %s5 = inlined_call_operand.vmem [shape: bf16[64,128], index: 5, kind: input, shape index: {}]
  %s6 = inlined_call_operand.vmem [shape: f32[1,128], index: 6, kind: input, shape index: {}]
  %s7 = inlined_call_operand.hbm [shape: f32[8,128], index: 7, kind: output, shape index: {}]
  %s8 = sld [smem:[#allocation0]]
  $region38: #{tpu_custom_call.1} parent=0
    _
  %s10 = ssub.s32 1, %s8
  %s11 = scalar_select 0, %s10, %s8
  $region1: #{tpu_custom_call.1} parent=0
    #allocation2 [shape = 'u8[4096]{0}', space=vmem, size = 0x1000, scoped, tag = 'output window, operand 0, single buffered']
    #allocation3 [shape = 's32[1]{0}', space=sflag, size = 0x4, scoped, tag = 'scoped memory for tpu_custom_call.1']
    %12 = vsyncpa [#allocation3], 0
    // Predicated region
    $region2: #{tpu_custom_call.1} parent=1 // pred_check
      _
    $region3: #{tpu_custom_call.1} parent=1 // pred_check_branch
      %14 = sbr.rel (0) target = $region5
    $region4: #{tpu_custom_call.1} parent=1 // pred_region
      _
    $region5: #{tpu_custom_call.1} parent=1 // pred_fallthru
      _
    // Predicated region
    $region6: #{tpu_custom_call.1} parent=1 // pred_check
      _
    $region7: #{tpu_custom_call.1} parent=1 // pred_check_branch
      %16 = sbr.rel (0) target = $region9
    $region8: #{tpu_custom_call.1} parent=1 // pred_region
      _
    $region9: #{tpu_custom_call.1} parent=1 // pred_fallthru
      _
    // Predicated region
    $region10: #{tpu_custom_call.1} parent=1 // pred_check
      _
    $region11: #{tpu_custom_call.1} parent=1 // pred_check_branch
      %18 = sbr.rel (0) target = $region13
    $region12: #{tpu_custom_call.1} parent=1 // pred_region
      _
    $region13: #{tpu_custom_call.1} parent=1 // pred_fallthru
      _
    // Predicated region
    $region14: #{tpu_custom_call.1} parent=1 // pred_check
      _
    $region15: #{tpu_custom_call.1} parent=1 // pred_check_branch
      %20 = sbr.rel (0) target = $region17
    $region16: #{tpu_custom_call.1} parent=1 // pred_region
      _
    $region17: #{tpu_custom_call.1} parent=1 // pred_fallthru
      _
    // Predicated region
    $region18: #{tpu_custom_call.1} parent=1 // pred_check
      _
    $region19: #{tpu_custom_call.1} parent=1 // pred_check_branch
      %22 = sbr.rel (0) target = $region21
    $region20: #{tpu_custom_call.1} parent=1 // pred_region
      _
    $region21: #{tpu_custom_call.1} parent=1 // pred_fallthru
      _
    // Predicated region
    $region22: #{tpu_custom_call.1} parent=1 // pred_check
      _
    $region23: #{tpu_custom_call.1} parent=1 // pred_check_branch
      %24 = sbr.rel (0) target = $region25
    $region24: #{tpu_custom_call.1} parent=1 // pred_region
      _
    $region25: #{tpu_custom_call.1} parent=1 // pred_fallthru
      _
    // Predicated region
    $region26: #{tpu_custom_call.1} parent=1 // pred_check
      _
    $region27: #{tpu_custom_call.1} parent=1 // pred_check_branch
      %26 = sbr.rel (0) target = $region29
    $region28: #{tpu_custom_call.1} parent=1 // pred_region
      _
    $region29: #{tpu_custom_call.1} parent=1 // pred_fallthru
      _
    %v28 = vld [vmem:[%s2] sm:$0x1]
    %v29 = vld [vmem:[%s4] sm:$0x1]
    %v30 = vld [vmem:[%s6] sm:$0x1]
    %v31 = vld [vmem:[%s0] sm:$0xff]
    %v32 = vld [vmem:[%s0 + $0x8] sm:$0xff]
    %v33 = vld [vmem:[%s0 + $0x10] sm:$0xff]
    %v34 = vld [vmem:[%s0 + $0x18] sm:$0xf]
    %v35 = vld [vmem:[%s1] sm:$0xf]
    %v36 = vld [vmem:[%s1 + $0x4] sm:$0xf]
    %v37 = vld [vmem:[%s1 + $0x8] sm:$0xf]
    %v38 = vld [vmem:[%s1 + $0xc] sm:$0xf]
    %v39 = vld [vmem:[%s1 + $0x10] sm:$0xf]
    %v40 = vld [vmem:[%s1 + $0x14] sm:$0xf]
    %v41 = vld [vmem:[%s1 + $0x18] sm:$0xf]
    %v42 = vld [vmem:[%s1 + $0x1c] sm:$0xf]
    %v43 = vld [vmem:[%s1 + $0x20] sm:$0xf]
    %v44 = vld [vmem:[%s1 + $0x24] sm:$0xf]
    %v45 = vld [vmem:[%s1 + $0x28] sm:$0xf]
    %v46 = vld [vmem:[%s1 + $0x2c] sm:$0xf]
    %v47 = vld [vmem:[%s1 + $0x30] sm:$0xf]
    %v48 = vld [vmem:[%s1 + $0x34] sm:$0xf]
    %v49 = vld [vmem:[%s1 + $0x38] sm:$0xf]
    %v50 = vld [vmem:[%s1 + $0x3c] sm:$0xf]
    %v51 = vld [vmem:[%s1 + $0x40] sm:$0xf]
    %v52 = vld [vmem:[%s1 + $0x44] sm:$0xf]
    %v53 = vld [vmem:[%s1 + $0x48] sm:$0xf]
    %v54 = vld [vmem:[%s1 + $0x4c] sm:$0xf]
    %v55 = vld [vmem:[%s1 + $0x50] sm:$0xf]
    %v56 = vld [vmem:[%s1 + $0x54] sm:$0xf]
    %v57 = vld [vmem:[%s1 + $0x58] sm:$0xf]
    %v58 = vld [vmem:[%s1 + $0x5c] sm:$0xf]
    %v59 = vld [vmem:[%s1 + $0x60] sm:$0xf]
    %v60 = vld [vmem:[%s1 + $0x64] sm:$0xf]
    %v61 = vld [vmem:[%s1 + $0x68] sm:$0xf]
    %v62 = vld [vmem:[%s1 + $0x6c] sm:$0xf]
    %v63 = vld [vmem:[%s1 + $0x70] sm:$0xf]
    %v64 = vld [vmem:[%s1 + $0x74] sm:$0xf]
    %v65 = vld [vmem:[%s1 + $0x78] sm:$0xf]
    %v66 = vld [vmem:[%s1 + $0x7c] sm:$0xf]
    %v67 = vld [vmem:[%s1 + $0x80] sm:$0xf]
    %v68 = vld [vmem:[%s1 + $0x84] sm:$0xf]
    %v69 = vld [vmem:[%s1 + $0x88] sm:$0xf]
    %v70 = vld [vmem:[%s1 + $0x8c] sm:$0xf]
    %v71 = vld [vmem:[%s1 + $0x90] sm:$0xf]
    %v72 = vld [vmem:[%s1 + $0x94] sm:$0xf]
    %v73 = vld [vmem:[%s1 + $0x98] sm:$0xf]
    %v74 = vld [vmem:[%s1 + $0x9c] sm:$0xf]
    %v75 = vld [vmem:[%s1 + $0xa0] sm:$0xf]
    %v76 = vld [vmem:[%s1 + $0xa4] sm:$0xf]
    %v77 = vld [vmem:[%s1 + $0xa8] sm:$0xf]
    %v78 = vld [vmem:[%s1 + $0xac] sm:$0xf]
    %v79 = vld [vmem:[%s1 + $0xb0] sm:$0xf]
    %v80 = vld [vmem:[%s1 + $0xb4] sm:$0xf]
    %v81 = vld [vmem:[%s1 + $0xb8] sm:$0xf]
    %v82 = vld [vmem:[%s1 + $0xbc] sm:$0xf]
    %v83 = vld [vmem:[%s1 + $0xc0] sm:$0xf]
    %v84 = vld [vmem:[%s1 + $0xc4] sm:$0xf]
    %v85 = vld [vmem:[%s1 + $0xc8] sm:$0xf]
    %v86 = vld [vmem:[%s1 + $0xcc] sm:$0xf]
    %v87 = vld [vmem:[%s1 + $0xd0] sm:$0xf]
    %v88 = vld [vmem:[%s1 + $0xd4] sm:$0xf]
    %v89 = vld [vmem:[%s1 + $0xd8] sm:$0xf]
    %v90 = vld [vmem:[%s1 + $0xdc] sm:$0xf]
    %v91 = vld [vmem:[%s1 + $0xe0] sm:$0xf]
    %v92 = vld [vmem:[%s1 + $0xe4] sm:$0xf]
    %v93 = vld [vmem:[%s1 + $0xe8] sm:$0xf]
    %v94 = vld [vmem:[%s1 + $0xec] sm:$0xf]
    %v95 = vld [vmem:[%s1 + $0xf0] sm:$0xf]
    %v96 = vld [vmem:[%s1 + $0xf4] sm:$0xf]
    %v97 = vld [vmem:[%s1 + $0xf8] sm:$0xf]
    %v98 = vld [vmem:[%s1 + $0xfc] sm:$0xf]
    %v99 = vld [vmem:[%s1 + $0x100] sm:$0xf]
    %v100 = vld [vmem:[%s1 + $0x104] sm:$0xf]
    %v101 = vld [vmem:[%s1 + $0x108] sm:$0xf]
    %v102 = vld [vmem:[%s1 + $0x10c] sm:$0xf]
    %v103 = vld [vmem:[%s1 + $0x110] sm:$0xf]
    %v104 = vld [vmem:[%s1 + $0x114] sm:$0xf]
    %v105 = vld [vmem:[%s1 + $0x118] sm:$0xf]
    %v106 = vld [vmem:[%s1 + $0x11c] sm:$0xf]
    %v107 = vld [vmem:[%s1 + $0x120] sm:$0xf]
    %v108 = vld [vmem:[%s1 + $0x124] sm:$0xf]
    %v109 = vld [vmem:[%s1 + $0x128] sm:$0xf]
    %v110 = vld [vmem:[%s1 + $0x12c] sm:$0xf]
    %v111 = vld [vmem:[%s1 + $0x130] sm:$0xf]
    %v112 = vld [vmem:[%s1 + $0x134] sm:$0xf]
    %v113 = vld [vmem:[%s1 + $0x138] sm:$0xf]
    %v114 = vld [vmem:[%s1 + $0x13c] sm:$0xf]
    %v115 = vld [vmem:[%s1 + $0x140] sm:$0xf]
    %v116 = vld [vmem:[%s1 + $0x144] sm:$0xf]
    %v117 = vld [vmem:[%s1 + $0x148] sm:$0xf]
    %v118 = vld [vmem:[%s1 + $0x14c] sm:$0xf]
    %v119 = vld [vmem:[%s1 + $0x150] sm:$0xf]
    %v120 = vld [vmem:[%s1 + $0x154] sm:$0xf]
    %v121 = vld [vmem:[%s1 + $0x158] sm:$0xf]
    %v122 = vld [vmem:[%s1 + $0x15c] sm:$0xf]
    %v123 = vld [vmem:[%s1 + $0x160] sm:$0xf]
    %v124 = vld [vmem:[%s1 + $0x164] sm:$0xf]
    %v125 = vld [vmem:[%s1 + $0x168] sm:$0xf]
    %v126 = vld [vmem:[%s1 + $0x16c] sm:$0xf]
    %v127 = vld [vmem:[%s1 + $0x170] sm:$0xf]
    %v128 = vld [vmem:[%s1 + $0x174] sm:$0xf]
    %v129 = vld [vmem:[%s1 + $0x178] sm:$0xf]
    %v130 = vld [vmem:[%s1 + $0x17c] sm:$0xf]
    %v131 = vld [vmem:[%s1 + $0x180] sm:$0xf]
    %v132 = vld [vmem:[%s1 + $0x184] sm:$0xf]
    %v134 = vperm.slane %v28, 0
    %v140 = vunpack.c.l.b16 %v31
    %v141 = vunpack.c.h.b16 %v31
    %v142 = vunpack.c.l.b16 %v32
    %v143 = vunpack.c.h.b16 %v32
    %v144 = vunpack.c.l.b16 %v33
    %v145 = vunpack.c.h.b16 %v33
    %v146 = vunpack.c.l.b16 %v34
    %v147 = vpack.c.b16 %v140, %v140
    %v148 = vpack.c.b16 %v141, %v141
    %v149 = vpack.c.b16 %v142, %v142
    %v150 = vpack.c.b16 %v143, %v143
    %v151 = vpack.c.b16 %v144, %v144
    %v152 = vpack.c.b16 %v145, %v145
    %v153 = vpack.c.b16 %v146, %v146
    %v258 = vunpack.c.l.b16 %v35
    %v259 = vunpack.c.l.b16 %v36
    %v260 = vunpack.c.l.b16 %v37
    %v261 = vunpack.c.l.b16 %v38
    %v262 = vunpack.c.l.b16 %v39
    %v263 = vunpack.c.l.b16 %v40
    %v264 = vunpack.c.l.b16 %v41
    %v265 = vunpack.c.l.b16 %v42
    %v266 = vunpack.c.l.b16 %v43
    %v267 = vunpack.c.l.b16 %v44
    %v268 = vunpack.c.l.b16 %v45
    %v269 = vunpack.c.l.b16 %v46
    %v270 = vunpack.c.l.b16 %v47
    %v271 = vunpack.c.l.b16 %v48
    %v272 = vunpack.c.l.b16 %v49
    %v273 = vunpack.c.l.b16 %v50
    %v274 = vunpack.c.l.b16 %v51
    %v275 = vunpack.c.l.b16 %v52
    %v276 = vunpack.c.l.b16 %v53
    %v277 = vunpack.c.l.b16 %v54
    %v278 = vunpack.c.l.b16 %v55
    %v279 = vunpack.c.l.b16 %v56
    %v280 = vunpack.c.l.b16 %v57
    %v281 = vunpack.c.l.b16 %v58
    %v282 = vunpack.c.l.b16 %v59
    %v283 = vunpack.c.l.b16 %v60
    %v284 = vunpack.c.l.b16 %v61
    %v285 = vunpack.c.l.b16 %v62
    %v286 = vunpack.c.l.b16 %v63
    %v287 = vunpack.c.l.b16 %v64
    %v288 = vunpack.c.l.b16 %v65
    %v289 = vunpack.c.l.b16 %v66
    %v290 = vunpack.c.l.b16 %v67
    %v291 = vunpack.c.l.b16 %v68
    %v292 = vunpack.c.l.b16 %v69
    %v293 = vunpack.c.l.b16 %v70
    %v294 = vunpack.c.l.b16 %v71
    %v295 = vunpack.c.l.b16 %v72
    %v296 = vunpack.c.l.b16 %v73
    %v297 = vunpack.c.l.b16 %v74
    %v298 = vunpack.c.l.b16 %v75
    %v299 = vunpack.c.l.b16 %v76
    %v300 = vunpack.c.l.b16 %v77
    %v301 = vunpack.c.l.b16 %v78
    %v302 = vunpack.c.l.b16 %v79
    %v303 = vunpack.c.l.b16 %v80
    %v304 = vunpack.c.l.b16 %v81
    %v305 = vunpack.c.l.b16 %v82
    %v306 = vunpack.c.l.b16 %v83
    %v307 = vunpack.c.l.b16 %v84
    %v308 = vunpack.c.l.b16 %v85
    %v309 = vunpack.c.l.b16 %v86
    %v310 = vunpack.c.l.b16 %v87
    %v311 = vunpack.c.l.b16 %v88
    %v312 = vunpack.c.l.b16 %v89
    %v313 = vunpack.c.l.b16 %v90
    %v314 = vunpack.c.l.b16 %v91
    %v315 = vunpack.c.l.b16 %v92
    %v316 = vunpack.c.l.b16 %v93
    %v317 = vunpack.c.l.b16 %v94
    %v318 = vunpack.c.l.b16 %v95
    %v319 = vunpack.c.l.b16 %v96
    %v320 = vunpack.c.l.b16 %v97
    %v321 = vunpack.c.l.b16 %v98
    %v322 = vunpack.c.l.b16 %v99
    %v323 = vunpack.c.l.b16 %v100
    %v324 = vunpack.c.l.b16 %v101
    %v325 = vunpack.c.l.b16 %v102
    %v326 = vunpack.c.l.b16 %v103
    %v327 = vunpack.c.l.b16 %v104
    %v328 = vunpack.c.l.b16 %v105
    %v329 = vunpack.c.l.b16 %v106
    %v330 = vunpack.c.l.b16 %v107
    %v331 = vunpack.c.l.b16 %v108
    %v332 = vunpack.c.l.b16 %v109
    %v333 = vunpack.c.l.b16 %v110
    %v334 = vunpack.c.l.b16 %v111
    %v335 = vunpack.c.l.b16 %v112
    %v336 = vunpack.c.l.b16 %v113
    %v337 = vunpack.c.l.b16 %v114
    %v338 = vunpack.c.l.b16 %v115
    %v339 = vunpack.c.l.b16 %v116
    %v340 = vunpack.c.l.b16 %v117
    %v341 = vunpack.c.l.b16 %v118
    %v342 = vunpack.c.l.b16 %v119
    %v343 = vunpack.c.l.b16 %v120
    %v344 = vunpack.c.l.b16 %v121
    %v345 = vunpack.c.l.b16 %v122
    %v346 = vunpack.c.l.b16 %v123
    %v347 = vunpack.c.l.b16 %v124
    %v348 = vunpack.c.l.b16 %v125
    %v349 = vunpack.c.l.b16 %v126
    %v350 = vunpack.c.l.b16 %v127
    %v351 = vunpack.c.l.b16 %v128
    %v352 = vunpack.c.l.b16 %v129
    %v353 = vunpack.c.l.b16 %v130
    %v354 = vunpack.c.l.b16 %v131
    %v355 = vunpack.c.l.b16 %v132
    %v356 = vpack.c.b16 %v259, %v258
    %v357 = vpack.c.b16 %v261, %v260
    %v358 = vpack.c.b16 %v263, %v262
    %v359 = vpack.c.b16 %v265, %v264
    %v360 = vpack.c.b16 %v267, %v266
    %v361 = vpack.c.b16 %v269, %v268
    %v362 = vpack.c.b16 %v271, %v270
    %v363 = vpack.c.b16 %v273, %v272
    %v364 = vpack.c.b16 %v275, %v274
    %v365 = vpack.c.b16 %v277, %v276
    %v366 = vpack.c.b16 %v279, %v278
    %v367 = vpack.c.b16 %v281, %v280
    %v368 = vpack.c.b16 %v283, %v282
    %v369 = vpack.c.b16 %v285, %v284
    %v370 = vpack.c.b16 %v287, %v286
    %v371 = vpack.c.b16 %v289, %v288
    %v372 = vpack.c.b16 %v291, %v290
    %v373 = vpack.c.b16 %v293, %v292
    %v374 = vpack.c.b16 %v295, %v294
    %v375 = vpack.c.b16 %v297, %v296
    %v376 = vpack.c.b16 %v299, %v298
    %v377 = vpack.c.b16 %v301, %v300
    %v378 = vpack.c.b16 %v303, %v302
    %v379 = vpack.c.b16 %v305, %v304
    %v380 = vpack.c.b16 %v307, %v306
    %v381 = vpack.c.b16 %v309, %v308
    %v382 = vpack.c.b16 %v311, %v310
    %v383 = vpack.c.b16 %v313, %v312
    %v384 = vpack.c.b16 %v315, %v314
    %v385 = vpack.c.b16 %v317, %v316
    %v386 = vpack.c.b16 %v319, %v318
    %v387 = vpack.c.b16 %v321, %v320
    %v388 = vpack.c.b16 %v323, %v322
    %v389 = vpack.c.b16 %v325, %v324
    %v390 = vpack.c.b16 %v327, %v326
    %v391 = vpack.c.b16 %v329, %v328
    %v392 = vpack.c.b16 %v331, %v330
    %v393 = vpack.c.b16 %v333, %v332
    %v394 = vpack.c.b16 %v335, %v334
    %v395 = vpack.c.b16 %v337, %v336
    %v396 = vpack.c.b16 %v339, %v338
    %v397 = vpack.c.b16 %v341, %v340
    %v398 = vpack.c.b16 %v343, %v342
    %v399 = vpack.c.b16 %v345, %v344
    %v400 = vpack.c.b16 %v347, %v346
    %v401 = vpack.c.b16 %v349, %v348
    %v402 = vpack.c.b16 %v351, %v350
    %v403 = vpack.c.b16 %v353, %v352
    %v404 = vpack.c.b16 %v355, %v354
    %vm454 = vcmask 130048
    %v456 = vsel %vm454, %v153, 0
    %458 = vmatpush.bf16.msra.mxu0 %v363
    %459 = vmatpush.bf16.msra.mxu0 %v362
    %460 = vmatpush.bf16.msra.mxu0 %v361
    %461 = vmatpush.bf16.msra.mxu0 %v360
    %462 = vmatpush.bf16.msra.mxu0 %v359
    %463 = vmatpush.bf16.msra.mxu0 %v358
    %464 = vmatpush.bf16.msra.mxu0 %v357
    %465 = vmatpush.bf16.msra.mxu0 %v356
    %466 = vmatmul.bf16.gmra.mxu0 %v147
    %v467 = vpop.f32.mrf.mxu0
    %v468 = vadd.f32 %v134, %v467
    %v469 = vpop.f32.mrf.mxu0
    %470 = vdwg.mxu0
    %471 = vmatpush.bf16.msra.mxu0 %v371
    %472 = vmatpush.bf16.msra.mxu0 %v370
    %473 = vmatpush.bf16.msra.mxu0 %v369
    %474 = vmatpush.bf16.msra.mxu0 %v368
    %475 = vmatpush.bf16.msra.mxu0 %v367
    %476 = vmatpush.bf16.msra.mxu0 %v366
    %477 = vmatpush.bf16.msra.mxu0 %v365
    %478 = vmatpush.bf16.msra.mxu0 %v364
    %479 = vmatmul.bf16.gmra.mxu0 %v148
    %v480 = vpop.f32.mrf.mxu0
    %v481 = vadd.f32 %v468, %v480
    %v482 = vpop.f32.mrf.mxu0
    %483 = vdwg.mxu0
    %484 = vmatpush.bf16.msra.mxu0 %v379
    %485 = vmatpush.bf16.msra.mxu0 %v378
    %486 = vmatpush.bf16.msra.mxu0 %v377
    %487 = vmatpush.bf16.msra.mxu0 %v376
    %488 = vmatpush.bf16.msra.mxu0 %v375
    %489 = vmatpush.bf16.msra.mxu0 %v374
    %490 = vmatpush.bf16.msra.mxu0 %v373
    %491 = vmatpush.bf16.msra.mxu0 %v372
    %492 = vmatmul.bf16.gmra.mxu0 %v149
    %v493 = vpop.f32.mrf.mxu0
    %v494 = vadd.f32 %v481, %v493
    %v495 = vpop.f32.mrf.mxu0
    %496 = vdwg.mxu0
    %497 = vmatpush.bf16.msra.mxu0 %v387
    %498 = vmatpush.bf16.msra.mxu0 %v386
    %499 = vmatpush.bf16.msra.mxu0 %v385
    %500 = vmatpush.bf16.msra.mxu0 %v384
    %501 = vmatpush.bf16.msra.mxu0 %v383
    %502 = vmatpush.bf16.msra.mxu0 %v382
    %503 = vmatpush.bf16.msra.mxu0 %v381
    %504 = vmatpush.bf16.msra.mxu0 %v380
    %505 = vmatmul.bf16.gmra.mxu0 %v150
    %v506 = vpop.f32.mrf.mxu0
    %v507 = vadd.f32 %v494, %v506
    %v508 = vpop.f32.mrf.mxu0
    %509 = vdwg.mxu0
    %510 = vmatpush.bf16.msra.mxu0 %v395
    %511 = vmatpush.bf16.msra.mxu0 %v394
    %512 = vmatpush.bf16.msra.mxu0 %v393
    %513 = vmatpush.bf16.msra.mxu0 %v392
    %514 = vmatpush.bf16.msra.mxu0 %v391
    %515 = vmatpush.bf16.msra.mxu0 %v390
    %516 = vmatpush.bf16.msra.mxu0 %v389
    %517 = vmatpush.bf16.msra.mxu0 %v388
    %518 = vmatmul.bf16.gmra.mxu0 %v151
    %v519 = vpop.f32.mrf.mxu0
    %v520 = vadd.f32 %v507, %v519
    %v521 = vpop.f32.mrf.mxu0
    %522 = vdwg.mxu0
    %523 = vmatpush.bf16.msra.mxu0 %v403
    %524 = vmatpush.bf16.msra.mxu0 %v402
    %525 = vmatpush.bf16.msra.mxu0 %v401
    %526 = vmatpush.bf16.msra.mxu0 %v400
    %527 = vmatpush.bf16.msra.mxu0 %v399
    %528 = vmatpush.bf16.msra.mxu0 %v398
    %529 = vmatpush.bf16.msra.mxu0 %v397
    %530 = vmatpush.bf16.msra.mxu0 %v396
    %531 = vmatmul.bf16.gmra.mxu0 %v152
    %v532 = vpop.f32.mrf.mxu0
    %v533 = vadd.f32 %v520, %v532
    %v534 = vpop.f32.mrf.mxu0
    %535 = vdwg.mxu0
    %536 = vmatpush.bf16.msra.mxu0 0
    %537 = vmatpush.bf16.msra.mxu0 0
    %538 = vmatpush.bf16.msra.mxu0 0
    %539 = vmatpush.bf16.msra.mxu0 0
    %540 = vmatpush.bf16.msra.mxu0 0
    %541 = vmatpush.bf16.msra.mxu0 0
    %542 = vmatpush.bf16.msra.mxu0 0
    %543 = vmatpush.bf16.msra.mxu0 %v404
    %544 = vmatmul.bf16.gmra.mxu0 %v456
    %v545 = vpop.f32.mrf.mxu0
    %v546 = vadd.f32 %v533, %v545
    %v547 = vpop.f32.mrf.mxu0
    %548 = vdwg.mxu0
    %v549 = vmax.f32 %v546, 0.0
    %v550 = vpack.c.bf16 %v549, %v549
    %v551 = vld [vmem:[%s3] sm:$0xf]
    %v552 = vld [vmem:[%s3 + $0x4] sm:$0xf]
    %v553 = vld [vmem:[%s3 + $0x8] sm:$0xf]
    %v554 = vld [vmem:[%s3 + $0xc] sm:$0xf]
    %v555 = vld [vmem:[%s3 + $0x10] sm:$0xf]
    %v556 = vld [vmem:[%s3 + $0x14] sm:$0xf]
    %v557 = vld [vmem:[%s3 + $0x18] sm:$0xf]
    %v558 = vld [vmem:[%s3 + $0x1c] sm:$0xf]
    %v560 = vperm.slane %v29, 0
    %v570 = vunpack.c.l.b16 %v551
    %v571 = vunpack.c.l.b16 %v552
    %v572 = vunpack.c.l.b16 %v553
    %v573 = vunpack.c.l.b16 %v554
    %v574 = vunpack.c.l.b16 %v555
    %v575 = vunpack.c.l.b16 %v556
    %v576 = vunpack.c.l.b16 %v557
    %v577 = vunpack.c.l.b16 %v558
    %v578 = vpack.c.b16 %v571, %v570
    %v579 = vpack.c.b16 %v573, %v572
    %v580 = vpack.c.b16 %v575, %v574
    %v581 = vpack.c.b16 %v577, %v576
    %vm586 = vcmask 523264
    %v588 = vsel %vm586, %v550, 0
    %590 = vmatpush.bf16.msra.mxu0 0
    %591 = vmatpush.bf16.msra.mxu0 0
    %592 = vmatpush.bf16.msra.mxu0 0
    %593 = vmatpush.bf16.msra.mxu0 0
    %594 = vmatpush.bf16.msra.mxu0 %v581
    %595 = vmatpush.bf16.msra.mxu0 %v580
    %596 = vmatpush.bf16.msra.mxu0 %v579
    %597 = vmatpush.bf16.msra.mxu0 %v578
    %598 = vmatmul.bf16.gmra.mxu0 %v588
    %v599 = vpop.f32.mrf.mxu0
    %v600 = vadd.f32 %v560, %v599
    %v601 = vpop.f32.mrf.mxu0
    %602 = vdwg.mxu0
    %v603 = vmax.f32 %v600, 0.0
    %v604 = vpack.c.bf16 %v603, %v603
    %v605 = vld [vmem:[%s5] sm:$0xf]
    %v606 = vld [vmem:[%s5 + $0x4] sm:$0xf]
    %v607 = vld [vmem:[%s5 + $0x8] sm:$0xf]
    %v608 = vld [vmem:[%s5 + $0xc] sm:$0xf]
    %v609 = vld [vmem:[%s5 + $0x10] sm:$0xf]
    %v610 = vld [vmem:[%s5 + $0x14] sm:$0xf]
    %v611 = vld [vmem:[%s5 + $0x18] sm:$0xf]
    %v612 = vld [vmem:[%s5 + $0x1c] sm:$0xf]
    %v614 = vperm.slane %v30, 0
    %v624 = vunpack.c.l.b16 %v605
    %v625 = vunpack.c.l.b16 %v606
    %v626 = vunpack.c.l.b16 %v607
    %v627 = vunpack.c.l.b16 %v608
    %v628 = vunpack.c.l.b16 %v609
    %v629 = vunpack.c.l.b16 %v610
    %v630 = vunpack.c.l.b16 %v611
    %v631 = vunpack.c.l.b16 %v612
    %v632 = vpack.c.b16 %v625, %v624
    %v633 = vpack.c.b16 %v627, %v626
    %v634 = vpack.c.b16 %v629, %v628
    %v635 = vpack.c.b16 %v631, %v630
    %v641 = vsel %vm586, %v604, 0
    %643 = vmatpush.bf16.msra.mxu0 0
    %644 = vmatpush.bf16.msra.mxu0 0
    %645 = vmatpush.bf16.msra.mxu0 0
    %646 = vmatpush.bf16.msra.mxu0 0
    %647 = vmatpush.bf16.msra.mxu0 %v635
    %648 = vmatpush.bf16.msra.mxu0 %v634
    %649 = vmatpush.bf16.msra.mxu0 %v633
    %650 = vmatpush.bf16.msra.mxu0 %v632
    %651 = vmatmul.bf16.gmra.mxu0 %v641
    %v652 = vpop.f32.mrf.mxu0
    %v653 = vadd.f32 %v614, %v652
    %v654 = vpop.f32.mrf.mxu0
    %655 = vdwg.mxu0
    %656 = vst [vmem:[#allocation2] sm:$0xff] %v653
    // Predicated region
    $region30: #{tpu_custom_call.1} parent=1 // pred_check
      _
    $region31: #{tpu_custom_call.1} parent=1 // pred_check_branch
      %658 = sbr.rel (0) target = $region33
    $region32: #{tpu_custom_call.1} parent=1 // pred_region
      %660 = vsyncadd [#allocation3], 0
      %s662 = sshll.u32 [#allocation2], 4
      %s663 = int_to_ptr.vmem [resolvable:$true] %s662
      %s664 = sshll.u32 %s7, 4
      %s665 = int_to_ptr.hbm [resolvable:$true] %s664
      %667 = dma.vmem_to_hbm [thread:$0]  %s663, 128, %s665, [#allocation3]
    $region33: #{tpu_custom_call.1} parent=1 // pred_fallthru
      _
    // Predicated region
    $region34: #{tpu_custom_call.1} parent=1 // pred_check
      _
    $region35: #{tpu_custom_call.1} parent=1 // pred_check_branch
      %669 = sbr.rel (0) target = $region37
    $region36: #{tpu_custom_call.1} parent=1 // pred_region
      %671 = dma.done [#allocation3], 128
    $region37: #{tpu_custom_call.1} parent=1 // pred_fallthru
      _
    %672 = vsyncpa [#allocation3], 1

</llo_original>
